<compile_context>
chip_gen: v5e
topology: v5e:2x2
jax: 0.10.0
libtpu: 0.0.40
codegen_flags: <defaults>
</compile_context>

<pallas_src>
import math

import jax
import jax.numpy as jnp
from jax.experimental import pallas as pl
from jax.experimental.pallas import tpu as pltpu


# ---------------------------------------------------------------------------
# Kernel
# ---------------------------------------------------------------------------
def _autoencoder_forward_kernel(x_ref, o_ref):
    """forward(x) = decode(encode(x)) on one lane-dense (rows, 512) tile."""
    # TODO(synk): encode() is abstract in BaseAutoencoder; identity placeholder.
    encoded = x_ref[...]
    # TODO(synk): decode() is abstract in BaseAutoencoder; identity placeholder.
    decoded = encoded
    o_ref[...] = decoded


# ---------------------------------------------------------------------------
# Wrapper
# ---------------------------------------------------------------------------
_LANE_WIDTH = 512                      # lane-dense slab width (multiple of 128)
_TARGET_TILE_BYTES = 2 * 1024 * 1024   # ~2 MiB/tile; in+out double-buffered
                                       # = 8 MiB, under v5e's 16 MiB scoped VMEM.


def _sublane_multiple(dtype) -> int:
    """Native packed-sublane multiple: 8 (f32), 16 (bf16), 32 (int8/fp8)."""
    return max(8, 32 // jnp.dtype(dtype).itemsize)


@jax.jit
def base_autoencoder_forward(x: jax.Array) -> jax.Array:
    """BaseAutoencoder.forward as a single Pallas TPU kernel.

    x: any-shaped float/int array (e.g. NCHW).  Returns same shape/dtype,
    matching decode(encode(x)) for the (identity) base class.

    The input/output alias only avoids an extra copy if the caller donates x
    (jax.jit(..., donate_argnums=...)); otherwise XLA copies defensively.
    """
    orig_shape = x.shape
    dtype = x.dtype
    itemsize = jnp.dtype(dtype).itemsize
    total = math.prod(orig_shape) if orig_shape else 1
    sub = _sublane_multiple(dtype)

    # Lane-dense view: (rows, 512).  Pad the flat length up as needed.
    rows_needed = -(-total // _LANE_WIDTH)

    # Rows per tile: ~_TARGET_TILE_BYTES, rounded down to the sublane multiple.
    max_tile_rows = max(
        sub, (_TARGET_TILE_BYTES // (_LANE_WIDTH * itemsize)) // sub * sub
    )

    if rows_needed <= max_tile_rows:
        # Single full-extent block: block dims equal the array dims, so the
        # (8,128) divisibility rule is bypassed and no row padding is needed.
        row_tile = rows_needed
        padded_rows = rows_needed
    else:
        # Tiled path: pad rows to a multiple of the tile so every tile is full
        # (no masked stores); at most one extra ~2 MiB tile of padding.
        row_tile = max_tile_rows
        padded_rows = -(-rows_needed // row_tile) * row_tile

    padded_total = padded_rows * _LANE_WIDTH

    xf = x.reshape(-1)
    if padded_total != total:
        xf = jnp.pad(xf, (0, padded_total - total))
    x2d = xf.reshape(padded_rows, _LANE_WIDTH)

    grid = (padded_rows // row_tile,)

    out2d = pl.pallas_call(
        _autoencoder_forward_kernel,
        out_shape=jax.ShapeDtypeStruct((padded_rows, _LANE_WIDTH), dtype),
        grid=grid,
        in_specs=[pl.BlockSpec((row_tile, _LANE_WIDTH), lambda i: (i, 0))],
        out_specs=pl.BlockSpec((row_tile, _LANE_WIDTH), lambda i: (i, 0)),
        # Safe: output tile i depends only on input tile i (identical index
        # maps) and shapes/dtypes match exactly.
        input_output_aliases={0: 0},
        cost_estimate=pl.CostEstimate(
            flops=0,
            transcendentals=0,
            bytes_accessed=2 * padded_total * itemsize,
        ),
        compiler_params=pltpu.CompilerParams(
            # Pure per-tile copy, no cross-iteration carry.
            dimension_semantics=("parallel",),
        ),
    )(x2d)

    outf = out2d.reshape(-1)
    if padded_total != total:
        outf = outf[:total]
    return outf.reshape(orig_shape)


if __name__ == "__main__":
    key = jax.random.PRNGKey(0)
    # Small NCHW input consistent with a conv-style autoencoder interface.
    x = jax.random.normal(key, (2, 4, 16, 16), dtype=jnp.float32)

    out = base_autoencoder_forward(x)
    out = jax.block_until_ready(out)

    # Base-class forward is decode(encode(x)) with abstract (identity) stages;
    # verify shape/dtype/value semantics.
    assert out.shape == x.shape, (out.shape, x.shape)
    assert out.dtype == x.dtype, (out.dtype, x.dtype)
    assert bool(jnp.allclose(out, x)), "forward pass mismatch"

    print("KERNEL_OK")
</pallas_src>

<mosaic_0001>
module attributes {stable_mosaic.version = 11 : i64} {
  func.func @_autoencoder_forward_kernel(%arg0: i32, %arg1: memref<4x512xf32, #tpu.memory_space<vmem>>, %arg2: memref<4x512xf32, #tpu.memory_space<vmem>>) attributes {dimension_semantics = [#tpu.dimension_semantics<parallel>], iteration_bounds = array<i64: 1>, scalar_prefetch = 0 : i64, scratch_operands = 0 : i64, tpu.core_type = #tpu.core_type<tc>, window_params = [{transform_indices = @transform_0, window_bounds = array<i64: 4, 512>}, {transform_indices = @transform_1, window_bounds = array<i64: 4, 512>}]} {
    %c0 = arith.constant 0 : index
    %c0_0 = arith.constant 0 : index
    %0 = vector.load %arg1[%c0, %c0_0] : memref<4x512xf32, #tpu.memory_space<vmem>>, vector<4x512xf32>
    %c0_1 = arith.constant 0 : index
    %c0_2 = arith.constant 0 : index
    %1 = vector.load %arg2[%c0_1, %c0_2] : memref<4x512xf32, #tpu.memory_space<vmem>>, vector<4x512xf32>
    tpu.vector_store %arg2[%c0_1, %c0_2], %0 {strides = array<i32>} : memref<4x512xf32, #tpu.memory_space<vmem>>, vector<4x512xf32>,
    return
  }
  func.func @transform_0(%arg0: i32) -> (i32, i32) {
    %c0_i32 = arith.constant 0 : i32
    %c0_i32_0 = arith.constant 0 : i32
    return %arg0, %c0_i32 : i32, i32
  }
  func.func @transform_1(%arg0: i32) -> (i32, i32) {
    %c0_i32 = arith.constant 0 : i32
    %c0_i32_0 = arith.constant 0 : i32
    return %arg0, %c0_i32 : i32, i32
  }
}

</mosaic_0001>

<llo_original>
// kernel: base_autoencoder_forward.1
$region0: #{base_autoencoder_forward.1}
  #allocation0 [shape = 'u32[]', space=smem, size = 0x4, offset = 0x4, fixed_abs, tag = 'smem constant byte address 0x4 - core index']
  #allocation1 [shape = 'u32[72,128]{1,0:T(1,128)}', space=vmem, size = 0x9000, scoped, tag = 'internal scratch']
  %s0 = inlined_call_operand.vmem [shape: f32[4,512], index: 0, kind: input, shape index: {}, may-alias: {0,1}]
  %s1 = inlined_call_operand.vmem [shape: f32[4,512], index: 1, kind: output, shape index: {}, may-alias: {0,1}]
  %s2 = sld [smem:[#allocation0]]
  $region14: #{base_autoencoder_forward.1} parent=0
    _
  %s4 = ssub.s32 1, %s2
  %s5 = scalar_select 0, %s4, %s2
  // Predicated region
  $region2: #{base_autoencoder_forward.1} parent=0 // pred_check
    _
  $region3: #{base_autoencoder_forward.1} parent=0 // pred_check_branch
    %7 = sbr.rel (0) target = $region5
  $region4: #{base_autoencoder_forward.1} parent=0 // pred_region
    _
  $region5: #{base_autoencoder_forward.1} parent=0 // pred_fallthru
    _
  %v8 = vld [vmem:[%s0] sm:$0xff]
  %v9 = vld [vmem:[%s0 + $0x8] sm:$0xff]
  %10 = vst [vmem:[%s1] sm:$0xff] %v8
  %11 = vst [vmem:[%s1 + $0x8] sm:$0xff] %v9
  // Predicated region
  $region6: #{base_autoencoder_forward.1} parent=0 // pred_check
    _
  $region7: #{base_autoencoder_forward.1} parent=0 // pred_check_branch
    %13 = sbr.rel (0) target = $region9
  $region8: #{base_autoencoder_forward.1} parent=0 // pred_region
    _
  $region9: #{base_autoencoder_forward.1} parent=0 // pred_fallthru
    _
  // Predicated region
  $region10: #{base_autoencoder_forward.1} parent=0 // pred_check
    _
  $region11: #{base_autoencoder_forward.1} parent=0 // pred_check_branch
    %15 = sbr.rel (0) target = $region13
  $region12: #{base_autoencoder_forward.1} parent=0 // pred_region
    _
  $region13: #{base_autoencoder_forward.1} parent=0 // pred_fallthru
    _

</llo_original>
